<compile_context>
chip_gen: v5e
topology: v5e:2x2
jax: 0.10.0
libtpu: 0.0.40
codegen_flags: <defaults>
</compile_context>

<pallas_src>
import functools
import math

import jax
import jax.numpy as jnp
from jax import lax
from jax.experimental import pallas as pl
from jax.experimental.pallas import tpu as pltpu


def _attn_kernel(x_ref, wqkv_ref, bqkv_ref, wp_ref, bp_ref, o_ref, *, n_head):
    """One grid step handles a (Bb, T, C) slab of the batch."""
    bb, t, c = x_ref.shape
    hd = c // n_head

    # ---- fused QKV projection (single MXU matmul, M = Bb*T rows) ---------
    x2 = x_ref[...].reshape(bb * t, c)                                # (Bb*T, C)
    qkv = jnp.dot(x2, wqkv_ref[...],
                  preferred_element_type=jnp.float32) + bqkv_ref[...]
    qkv = qkv.reshape(bb, t, 3 * c)                                   # (Bb, T, 3C)
    # 1/sqrt(hd) is already folded into the Q weights/bias by the wrapper.

    # Causal mask, built once per grid step and reused across heads.
    row = lax.broadcasted_iota(jnp.int32, (t, t), 0)
    col = lax.broadcasted_iota(jnp.int32, (t, t), 1)
    causal = (row >= col)[None]                                       # (1, T, T)

    # ---- per-head attention, batched over the Bb batch slab --------------
    # Heads remain a static Python loop (n_head is small); each iteration is a
    # Bb-batched 3-D einsum, avoiding a 4-D head-major transpose that Mosaic
    # does not lower robustly.  The output projection is accumulated per head
    # (sum_h y_h @ Wp_h == concat_h(y_h) @ Wp), avoiding a narrow-lane concat.
    acc = jnp.zeros((bb * t, c), jnp.float32)
    for h in range(n_head):
        qh = qkv[:, :, 0 * c + h * hd:0 * c + (h + 1) * hd]           # (Bb, T, hd)
        kh = qkv[:, :, 1 * c + h * hd:1 * c + (h + 1) * hd]
        vh = qkv[:, :, 2 * c + h * hd:2 * c + (h + 1) * hd]

        att = jnp.einsum("bqd,bkd->bqk", qh, kh,
                         preferred_element_type=jnp.float32)          # (Bb, T, T)
        att = jnp.where(causal, att, -jnp.inf)
        # Numerically stable softmax; the diagonal is always unmasked so every
        # row has at least one finite entry.
        att = jnp.exp(att - jnp.max(att, axis=-1, keepdims=True))
        inv = pl.reciprocal(jnp.sum(att, axis=-1, keepdims=True), approx=True)
        att = att * inv
        # TODO(synk): attn_drop / resid_drop are identity (eval mode / pdrop=0).

        yh = jnp.einsum("bqk,bkd->bqd", att, vh,
                        preferred_element_type=jnp.float32)           # (Bb, T, hd)
        acc = acc + jnp.dot(yh.reshape(bb * t, hd),
                            wp_ref[h * hd:(h + 1) * hd, :],
                            preferred_element_type=jnp.float32)       # (Bb*T, C)

    out = acc + bp_ref[...]
    o_ref[...] = out.reshape(bb, t, c).astype(o_ref.dtype)


def causal_self_attention(x, params, n_head, block_b=None):
    """x: (B, T, C) float32. params: dict of torch-convention weights/biases."""
    B, T, C = x.shape
    assert C % n_head == 0
    hd = C // n_head
    scale = 1.0 / math.sqrt(hd)

    # Batch elements per grid step: as many as possible (small problem fits
    # VMEM easily), capped at 32.
    if block_b is None:
        block_b = next(bb for bb in (32, 16, 8, 4, 2, 1) if B % bb == 0)
    assert B % block_b == 0

    # Fuse Q/K/V weights, pre-transpose to (in, out), and fold the attention
    # scale into the Q weights/bias (one-time wrapper-side XLA work).
    wqkv_t = jnp.concatenate(
        [params["wq"].T * scale, params["wk"].T, params["wv"].T], axis=1)  # (C, 3C)
    bqkv = jnp.concatenate(
        [params["bq"] * scale, params["bk"], params["bv"]]).reshape(1, 3 * C)
    wp_t = params["wp"].T                                                  # (C, C)
    bp = params["bp"].reshape(1, C)

    kernel = functools.partial(_attn_kernel, n_head=n_head)
    grid = (B // block_b,)

    return pl.pallas_call(
        kernel,
        out_shape=jax.ShapeDtypeStruct((B, T, C), x.dtype),
        grid_spec=pltpu.PrefetchScalarGridSpec(
            num_scalar_prefetch=0,
            grid=grid,
            in_specs=[
                pl.BlockSpec((block_b, T, C), lambda i: (i, 0, 0)),   # x slab
                pl.BlockSpec((C, 3 * C), lambda i: (0, 0)),           # Wqkv^T (Q pre-scaled)
                pl.BlockSpec((1, 3 * C), lambda i: (0, 0)),           # bqkv
                pl.BlockSpec((C, C), lambda i: (0, 0)),               # Wproj^T
                pl.BlockSpec((1, C), lambda i: (0, 0)),               # bproj
            ],
            out_specs=pl.BlockSpec((block_b, T, C), lambda i: (i, 0, 0)),
        ),
        compiler_params=pltpu.CompilerParams(
            dimension_semantics=("parallel",)),
    )(x, wqkv_t, bqkv, wp_t, bp)


def _reference(x, params, n_head):
    """Pure-JAX reference mirroring the PyTorch forward (eval mode)."""
    B, T, C = x.shape
    hd = C // n_head

    def lin(x, w, b):
        return jnp.einsum("btc,oc->bto", x, w) + b

    q = lin(x, params["wq"], params["bq"]).reshape(B, T, n_head, hd).transpose(0, 2, 1, 3)
    k = lin(x, params["wk"], params["bk"]).reshape(B, T, n_head, hd).transpose(0, 2, 1, 3)
    v = lin(x, params["wv"], params["bv"]).reshape(B, T, n_head, hd).transpose(0, 2, 1, 3)
    att = jnp.einsum("bhqd,bhkd->bhqk", q, k) / math.sqrt(hd)
    mask = jnp.tril(jnp.ones((T, T)))[None, None]
    att = jnp.where(mask == 0, -jnp.inf, att)
    att = jax.nn.softmax(att, axis=-1)
    y = jnp.einsum("bhqk,bhkd->bhqd", att, v).transpose(0, 2, 1, 3).reshape(B, T, C)
    return lin(y, params["wp"], params["bp"])


if __name__ == "__main__":
    # config: n_embd=32, n_head=4, block_size>=T, attn_pdrop=resid_pdrop=0
    B, T, C, n_head = 2, 8, 32, 4

    key = jax.random.PRNGKey(0)
    keys = jax.random.split(key, 9)
    scale = 1.0 / math.sqrt(C)
    params = {
        "wq": jax.random.uniform(keys[0], (C, C), jnp.float32, -scale, scale),
        "wk": jax.random.uniform(keys[1], (C, C), jnp.float32, -scale, scale),
        "wv": jax.random.uniform(keys[2], (C, C), jnp.float32, -scale, scale),
        "wp": jax.random.uniform(keys[3], (C, C), jnp.float32, -scale, scale),
        "bq": jax.random.uniform(keys[4], (C,), jnp.float32, -scale, scale),
        "bk": jax.random.uniform(keys[5], (C,), jnp.float32, -scale, scale),
        "bv": jax.random.uniform(keys[6], (C,), jnp.float32, -scale, scale),
        "bp": jax.random.uniform(keys[7], (C,), jnp.float32, -scale, scale),
    }
    x = jax.random.normal(keys[8], (B, T, C), jnp.float32)

    out = jax.block_until_ready(causal_self_attention(x, params, n_head))
    ref = _reference(x, params, n_head)

    assert out.shape == (B, T, C)
    # Tolerance is slightly looser than bit-level because the softmax
    # denominator uses the approximate EUP reciprocal (pl.reciprocal approx=True).
    assert jnp.allclose(out, ref, atol=2e-3, rtol=2e-3), (
        "mismatch vs JAX reference, max abs diff = "
        + str(float(jnp.max(jnp.abs(out - ref)))))

    print("KERNEL_OK")
</pallas_src>

<mosaic_0001>
module attributes {stable_mosaic.version = 11 : i64} {
  func.func @_attn_kernel(%arg0: i32, %arg1: memref<2x8x32xf32, #tpu.memory_space<vmem>>, %arg2: memref<32x96xf32, #tpu.memory_space<vmem>>, %arg3: memref<1x96xf32, #tpu.memory_space<vmem>>, %arg4: memref<32x32xf32, #tpu.memory_space<vmem>>, %arg5: memref<1x32xf32, #tpu.memory_space<vmem>>, %arg6: memref<2x8x32xf32, #tpu.memory_space<vmem>>) attributes {dimension_semantics = [#tpu.dimension_semantics<parallel>], iteration_bounds = array<i64: 1>, scalar_prefetch = 0 : i64, scratch_operands = 0 : i64, tpu.core_type = #tpu.core_type<tc>, window_params = [{transform_indices = @transform_0, window_bounds = array<i64: 2, 8, 32>}, {pipeline_mode = #tpu.pipeline_mode<synchronous>, transform_indices = @transform_1, window_bounds = array<i64: 32, 96>}, {pipeline_mode = #tpu.pipeline_mode<synchronous>, transform_indices = @transform_2, window_bounds = array<i64: 1, 96>}, {pipeline_mode = #tpu.pipeline_mode<synchronous>, transform_indices = @transform_3, window_bounds = array<i64: 32, 32>}, {pipeline_mode = #tpu.pipeline_mode<synchronous>, transform_indices = @transform_4, window_bounds = array<i64: 1, 32>}, {transform_indices = @transform_5, window_bounds = array<i64: 2, 8, 32>}]} {
    %c0 = arith.constant 0 : index
    %c0_0 = arith.constant 0 : index
    %c0_1 = arith.constant 0 : index
    %0 = vector.load %arg1[%c0, %c0_0, %c0_1] : memref<2x8x32xf32, #tpu.memory_space<vmem>>, vector<2x8x32xf32>
    %1 = vector.shape_cast %0 : vector<2x8x32xf32> to vector<16x32xf32>
    %c0_2 = arith.constant 0 : index
    %c0_3 = arith.constant 0 : index
    %2 = vector.load %arg2[%c0_2, %c0_3] : memref<32x96xf32, #tpu.memory_space<vmem>>, vector<32x96xf32>
    %cst = arith.constant dense<0.000000e+00> : vector<16x96xf32>
    %3 = tpu.matmul %1, %2, %cst {dimension_numbers = #tpu.dot_dimension_numbers<[1], [0], [0], [1], [0, 0, 1, 1], [], []>} : vector<16x32xf32>, vector<32x96xf32>, vector<16x96xf32> -> vector<16x96xf32>
    %c0_4 = arith.constant 0 : index
    %c0_5 = arith.constant 0 : index
    %4 = vector.load %arg3[%c0_4, %c0_5] : memref<1x96xf32, #tpu.memory_space<vmem>>, vector<1x96xf32>
    %5 = vector.broadcast %4 : vector<1x96xf32> to vector<16x96xf32>
    %6 = arith.addf %3, %5 : vector<16x96xf32>
    %7 = vector.shape_cast %6 : vector<16x96xf32> to vector<2x8x96xf32>
    %8 = tpu.iota {dimensions = array<i32: 0>} : vector<8x8xi32>
    %9 = tpu.iota {dimensions = array<i32: 1>} : vector<8x8xi32>
    %10 = arith.cmpi sge, %8, %9 : vector<8x8xi32>
    %11 = vector.shape_cast %10 : vector<8x8xi1> to vector<1x8x8xi1>
    %cst_6 = arith.constant 0.000000e+00 : f32
    %12 = vector.broadcast %cst_6 : f32 to vector<16x32xf32>
    %13 = vector.extract_strided_slice %7 {offsets = [0, 0, 0], sizes = [2, 8, 8], strides = [1, 1, 1]} : vector<2x8x96xf32> to vector<2x8x8xf32>
    %14 = vector.extract_strided_slice %7 {offsets = [0, 0, 32], sizes = [2, 8, 8], strides = [1, 1, 1]} : vector<2x8x96xf32> to vector<2x8x8xf32>
    %15 = vector.extract_strided_slice %7 {offsets = [0, 0, 64], sizes = [2, 8, 8], strides = [1, 1, 1]} : vector<2x8x96xf32> to vector<2x8x8xf32>
    "tpu.trace_start"() <{level = 10 : i32, message = "bqd,bkd->bqk"}> : () -> ()
    %cst_7 = arith.constant dense<0.000000e+00> : vector<2x8x8xf32>
    %16 = tpu.matmul %13, %14, %cst_7 {dimension_numbers = #tpu.dot_dimension_numbers<[2], [2], [1], [1], [0, 0, 0, 1, 1, 1], [0], [0]>} : vector<2x8x8xf32>, vector<2x8x8xf32>, vector<2x8x8xf32> -> vector<2x8x8xf32>
    %cst_8 = arith.constant 0xFF800000 : f32
    "tpu.trace_stop"() : () -> ()
    %17 = vector.shape_cast %11 : vector<1x8x8xi1> to vector<1x8x8xi1>
    %18 = vector.broadcast %17 : vector<1x8x8xi1> to vector<2x8x8xi1>
    %19 = vector.broadcast %cst_8 : f32 to vector<2x8x8xf32>
    %20 = arith.select %18, %16, %19 : vector<2x8x8xi1>, vector<2x8x8xf32>
    %cst_9 = arith.constant dense<0xFF800000> : vector<2x8xf32>
    %21 = vector.multi_reduction <maximumf>, %20, %cst_9 [2] : vector<2x8x8xf32> to vector<2x8xf32>
    %22 = vector.shape_cast %21 : vector<2x8xf32> to vector<2x8x1xf32>
    %23 = vector.broadcast %22 : vector<2x8x1xf32> to vector<2x8x8xf32>
    %24 = arith.subf %20, %23 : vector<2x8x8xf32>
    %25 = math.exp %24 : vector<2x8x8xf32>
    %cst_10 = arith.constant dense<0.000000e+00> : vector<2x8xf32>
    %26 = vector.multi_reduction <add>, %25, %cst_10 [2] : vector<2x8x8xf32> to vector<2x8xf32>
    %27 = vector.shape_cast %26 : vector<2x8xf32> to vector<2x8x1xf32>
    %28 = tpu.reciprocal %27 {approx = true} : vector<2x8x1xf32> -> vector<2x8x1xf32>
    %29 = vector.broadcast %28 : vector<2x8x1xf32> to vector<2x8x8xf32>
    %30 = arith.mulf %25, %29 : vector<2x8x8xf32>
    "tpu.trace_start"() <{level = 10 : i32, message = "bqk,bkd->bqd"}> : () -> ()
    %cst_11 = arith.constant dense<0.000000e+00> : vector<2x8x8xf32>
    %31 = tpu.matmul %30, %15, %cst_11 {dimension_numbers = #tpu.dot_dimension_numbers<[2], [1], [1], [2], [0, 0, 0, 1, 1, 2], [0], [0]>} : vector<2x8x8xf32>, vector<2x8x8xf32>, vector<2x8x8xf32> -> vector<2x8x8xf32>
    "tpu.trace_stop"() : () -> ()
    %32 = vector.shape_cast %31 : vector<2x8x8xf32> to vector<16x8xf32>
    %c0_12 = arith.constant 0 : index
    %c0_13 = arith.constant 0 : index
    %33 = vector.load %arg4[%c0_12, %c0_13] : memref<32x32xf32, #tpu.memory_space<vmem>>, vector<8x32xf32>
    %cst_14 = arith.constant dense<0.000000e+00> : vector<16x32xf32>
    %34 = tpu.matmul %32, %33, %cst_14 {dimension_numbers = #tpu.dot_dimension_numbers<[1], [0], [0], [1], [0, 0, 1, 1], [], []>} : vector<16x8xf32>, vector<8x32xf32>, vector<16x32xf32> -> vector<16x32xf32>
    %35 = arith.addf %12, %34 : vector<16x32xf32>
    %36 = vector.extract_strided_slice %7 {offsets = [0, 0, 8], sizes = [2, 8, 8], strides = [1, 1, 1]} : vector<2x8x96xf32> to vector<2x8x8xf32>
    %37 = vector.extract_strided_slice %7 {offsets = [0, 0, 40], sizes = [2, 8, 8], strides = [1, 1, 1]} : vector<2x8x96xf32> to vector<2x8x8xf32>
    %38 = vector.extract_strided_slice %7 {offsets = [0, 0, 72], sizes = [2, 8, 8], strides = [1, 1, 1]} : vector<2x8x96xf32> to vector<2x8x8xf32>
    "tpu.trace_start"() <{level = 10 : i32, message = "bqd,bkd->bqk"}> : () -> ()
    %cst_15 = arith.constant dense<0.000000e+00> : vector<2x8x8xf32>
    %39 = tpu.matmul %36, %37, %cst_15 {dimension_numbers = #tpu.dot_dimension_numbers<[2], [2], [1], [1], [0, 0, 0, 1, 1, 1], [0], [0]>} : vector<2x8x8xf32>, vector<2x8x8xf32>, vector<2x8x8xf32> -> vector<2x8x8xf32>
    %cst_16 = arith.constant 0xFF800000 : f32
    "tpu.trace_stop"() : () -> ()
    %40 = vector.shape_cast %11 : vector<1x8x8xi1> to vector<1x8x8xi1>
    %41 = vector.broadcast %40 : vector<1x8x8xi1> to vector<2x8x8xi1>
    %42 = vector.broadcast %cst_16 : f32 to vector<2x8x8xf32>
    %43 = arith.select %41, %39, %42 : vector<2x8x8xi1>, vector<2x8x8xf32>
    %cst_17 = arith.constant dense<0xFF800000> : vector<2x8xf32>
    %44 = vector.multi_reduction <maximumf>, %43, %cst_17 [2] : vector<2x8x8xf32> to vector<2x8xf32>
    %45 = vector.shape_cast %44 : vector<2x8xf32> to vector<2x8x1xf32>
    %46 = vector.broadcast %45 : vector<2x8x1xf32> to vector<2x8x8xf32>
    %47 = arith.subf %43, %46 : vector<2x8x8xf32>
    %48 = math.exp %47 : vector<2x8x8xf32>
    %cst_18 = arith.constant dense<0.000000e+00> : vector<2x8xf32>
    %49 = vector.multi_reduction <add>, %48, %cst_18 [2] : vector<2x8x8xf32> to vector<2x8xf32>
    %50 = vector.shape_cast %49 : vector<2x8xf32> to vector<2x8x1xf32>
    %51 = tpu.reciprocal %50 {approx = true} : vector<2x8x1xf32> -> vector<2x8x1xf32>
    %52 = vector.broadcast %51 : vector<2x8x1xf32> to vector<2x8x8xf32>
    %53 = arith.mulf %48, %52 : vector<2x8x8xf32>
    "tpu.trace_start"() <{level = 10 : i32, message = "bqk,bkd->bqd"}> : () -> ()
    %cst_19 = arith.constant dense<0.000000e+00> : vector<2x8x8xf32>
    %54 = tpu.matmul %53, %38, %cst_19 {dimension_numbers = #tpu.dot_dimension_numbers<[2], [1], [1], [2], [0, 0, 0, 1, 1, 2], [0], [0]>} : vector<2x8x8xf32>, vector<2x8x8xf32>, vector<2x8x8xf32> -> vector<2x8x8xf32>
    "tpu.trace_stop"() : () -> ()
    %55 = vector.shape_cast %54 : vector<2x8x8xf32> to vector<16x8xf32>
    %c8 = arith.constant 8 : index
    %c0_20 = arith.constant 0 : index
    %56 = vector.load %arg4[%c8, %c0_20] : memref<32x32xf32, #tpu.memory_space<vmem>>, vector<8x32xf32>
    %cst_21 = arith.constant dense<0.000000e+00> : vector<16x32xf32>
    %57 = tpu.matmul %55, %56, %cst_21 {dimension_numbers = #tpu.dot_dimension_numbers<[1], [0], [0], [1], [0, 0, 1, 1], [], []>} : vector<16x8xf32>, vector<8x32xf32>, vector<16x32xf32> -> vector<16x32xf32>
    %58 = arith.addf %35, %57 : vector<16x32xf32>
    %59 = vector.extract_strided_slice %7 {offsets = [0, 0, 16], sizes = [2, 8, 8], strides = [1, 1, 1]} : vector<2x8x96xf32> to vector<2x8x8xf32>
    %60 = vector.extract_strided_slice %7 {offsets = [0, 0, 48], sizes = [2, 8, 8], strides = [1, 1, 1]} : vector<2x8x96xf32> to vector<2x8x8xf32>
    %61 = vector.extract_strided_slice %7 {offsets = [0, 0, 80], sizes = [2, 8, 8], strides = [1, 1, 1]} : vector<2x8x96xf32> to vector<2x8x8xf32>
    "tpu.trace_start"() <{level = 10 : i32, message = "bqd,bkd->bqk"}> : () -> ()
    %cst_22 = arith.constant dense<0.000000e+00> : vector<2x8x8xf32>
    %62 = tpu.matmul %59, %60, %cst_22 {dimension_numbers = #tpu.dot_dimension_numbers<[2], [2], [1], [1], [0, 0, 0, 1, 1, 1], [0], [0]>} : vector<2x8x8xf32>, vector<2x8x8xf32>, vector<2x8x8xf32> -> vector<2x8x8xf32>
    %cst_23 = arith.constant 0xFF800000 : f32
    "tpu.trace_stop"() : () -> ()
    %63 = vector.shape_cast %11 : vector<1x8x8xi1> to vector<1x8x8xi1>
    %64 = vector.broadcast %63 : vector<1x8x8xi1> to vector<2x8x8xi1>
    %65 = vector.broadcast %cst_23 : f32 to vector<2x8x8xf32>
    %66 = arith.select %64, %62, %65 : vector<2x8x8xi1>, vector<2x8x8xf32>
    %cst_24 = arith.constant dense<0xFF800000> : vector<2x8xf32>
    %67 = vector.multi_reduction <maximumf>, %66, %cst_24 [2] : vector<2x8x8xf32> to vector<2x8xf32>
    %68 = vector.shape_cast %67 : vector<2x8xf32> to vector<2x8x1xf32>
    %69 = vector.broadcast %68 : vector<2x8x1xf32> to vector<2x8x8xf32>
    %70 = arith.subf %66, %69 : vector<2x8x8xf32>
    %71 = math.exp %70 : vector<2x8x8xf32>
    %cst_25 = arith.constant dense<0.000000e+00> : vector<2x8xf32>
    %72 = vector.multi_reduction <add>, %71, %cst_25 [2] : vector<2x8x8xf32> to vector<2x8xf32>
    %73 = vector.shape_cast %72 : vector<2x8xf32> to vector<2x8x1xf32>
    %74 = tpu.reciprocal %73 {approx = true} : vector<2x8x1xf32> -> vector<2x8x1xf32>
    %75 = vector.broadcast %74 : vector<2x8x1xf32> to vector<2x8x8xf32>
    %76 = arith.mulf %71, %75 : vector<2x8x8xf32>
    "tpu.trace_start"() <{level = 10 : i32, message = "bqk,bkd->bqd"}> : () -> ()
    %cst_26 = arith.constant dense<0.000000e+00> : vector<2x8x8xf32>
    %77 = tpu.matmul %76, %61, %cst_26 {dimension_numbers = #tpu.dot_dimension_numbers<[2], [1], [1], [2], [0, 0, 0, 1, 1, 2], [0], [0]>} : vector<2x8x8xf32>, vector<2x8x8xf32>, vector<2x8x8xf32> -> vector<2x8x8xf32>
    "tpu.trace_stop"() : () -> ()
    %78 = vector.shape_cast %77 : vector<2x8x8xf32> to vector<16x8xf32>
    %c16 = arith.constant 16 : index
    %c0_27 = arith.constant 0 : index
    %79 = vector.load %arg4[%c16, %c0_27] : memref<32x32xf32, #tpu.memory_space<vmem>>, vector<8x32xf32>
    %cst_28 = arith.constant dense<0.000000e+00> : vector<16x32xf32>
    %80 = tpu.matmul %78, %79, %cst_28 {dimension_numbers = #tpu.dot_dimension_numbers<[1], [0], [0], [1], [0, 0, 1, 1], [], []>} : vector<16x8xf32>, vector<8x32xf32>, vector<16x32xf32> -> vector<16x32xf32>
    %81 = arith.addf %58, %80 : vector<16x32xf32>
    %82 = vector.extract_strided_slice %7 {offsets = [0, 0, 24], sizes = [2, 8, 8], strides = [1, 1, 1]} : vector<2x8x96xf32> to vector<2x8x8xf32>
    %83 = vector.extract_strided_slice %7 {offsets = [0, 0, 56], sizes = [2, 8, 8], strides = [1, 1, 1]} : vector<2x8x96xf32> to vector<2x8x8xf32>
    %84 = vector.extract_strided_slice %7 {offsets = [0, 0, 88], sizes = [2, 8, 8], strides = [1, 1, 1]} : vector<2x8x96xf32> to vector<2x8x8xf32>
    "tpu.trace_start"() <{level = 10 : i32, message = "bqd,bkd->bqk"}> : () -> ()
    %cst_29 = arith.constant dense<0.000000e+00> : vector<2x8x8xf32>
    %85 = tpu.matmul %82, %83, %cst_29 {dimension_numbers = #tpu.dot_dimension_numbers<[2], [2], [1], [1], [0, 0, 0, 1, 1, 1], [0], [0]>} : vector<2x8x8xf32>, vector<2x8x8xf32>, vector<2x8x8xf32> -> vector<2x8x8xf32>
    %cst_30 = arith.constant 0xFF800000 : f32
    "tpu.trace_stop"() : () -> ()
    %86 = vector.shape_cast %11 : vector<1x8x8xi1> to vector<1x8x8xi1>
    %87 = vector.broadcast %86 : vector<1x8x8xi1> to vector<2x8x8xi1>
    %88 = vector.broadcast %cst_30 : f32 to vector<2x8x8xf32>
    %89 = arith.select %87, %85, %88 : vector<2x8x8xi1>, vector<2x8x8xf32>
    %cst_31 = arith.constant dense<0xFF800000> : vector<2x8xf32>
    %90 = vector.multi_reduction <maximumf>, %89, %cst_31 [2] : vector<2x8x8xf32> to vector<2x8xf32>
    %91 = vector.shape_cast %90 : vector<2x8xf32> to vector<2x8x1xf32>
    %92 = vector.broadcast %91 : vector<2x8x1xf32> to vector<2x8x8xf32>
    %93 = arith.subf %89, %92 : vector<2x8x8xf32>
    %94 = math.exp %93 : vector<2x8x8xf32>
    %cst_32 = arith.constant dense<0.000000e+00> : vector<2x8xf32>
    %95 = vector.multi_reduction <add>, %94, %cst_32 [2] : vector<2x8x8xf32> to vector<2x8xf32>
    %96 = vector.shape_cast %95 : vector<2x8xf32> to vector<2x8x1xf32>
    %97 = tpu.reciprocal %96 {approx = true} : vector<2x8x1xf32> -> vector<2x8x1xf32>
    %98 = vector.broadcast %97 : vector<2x8x1xf32> to vector<2x8x8xf32>
    %99 = arith.mulf %94, %98 : vector<2x8x8xf32>
    "tpu.trace_start"() <{level = 10 : i32, message = "bqk,bkd->bqd"}> : () -> ()
    %cst_33 = arith.constant dense<0.000000e+00> : vector<2x8x8xf32>
    %100 = tpu.matmul %99, %84, %cst_33 {dimension_numbers = #tpu.dot_dimension_numbers<[2], [1], [1], [2], [0, 0, 0, 1, 1, 2], [0], [0]>} : vector<2x8x8xf32>, vector<2x8x8xf32>, vector<2x8x8xf32> -> vector<2x8x8xf32>
    "tpu.trace_stop"() : () -> ()
    %101 = vector.shape_cast %100 : vector<2x8x8xf32> to vector<16x8xf32>
    %c24 = arith.constant 24 : index
    %c0_34 = arith.constant 0 : index
    %102 = vector.load %arg4[%c24, %c0_34] : memref<32x32xf32, #tpu.memory_space<vmem>>, vector<8x32xf32>
    %cst_35 = arith.constant dense<0.000000e+00> : vector<16x32xf32>
    %103 = tpu.matmul %101, %102, %cst_35 {dimension_numbers = #tpu.dot_dimension_numbers<[1], [0], [0], [1], [0, 0, 1, 1], [], []>} : vector<16x8xf32>, vector<8x32xf32>, vector<16x32xf32> -> vector<16x32xf32>
    %104 = arith.addf %81, %103 : vector<16x32xf32>
    %c0_36 = arith.constant 0 : index
    %c0_37 = arith.constant 0 : index
    %105 = vector.load %arg5[%c0_36, %c0_37] : memref<1x32xf32, #tpu.memory_space<vmem>>, vector<1x32xf32>
    %106 = vector.broadcast %105 : vector<1x32xf32> to vector<16x32xf32>
    %107 = arith.addf %104, %106 : vector<16x32xf32>
    %108 = vector.shape_cast %107 : vector<16x32xf32> to vector<2x8x32xf32>
    %c0_38 = arith.constant 0 : index
    %c0_39 = arith.constant 0 : index
    %c0_40 = arith.constant 0 : index
    %109 = vector.load %arg6[%c0_38, %c0_39, %c0_40] : memref<2x8x32xf32, #tpu.memory_space<vmem>>, vector<2x8x32xf32>
    tpu.vector_store %arg6[%c0_38, %c0_39, %c0_40], %108 {strides = array<i32>} : memref<2x8x32xf32, #tpu.memory_space<vmem>>, vector<2x8x32xf32>,
    return
  }
  func.func @transform_0(%arg0: i32) -> (i32, i32, i32) {
    %c0_i32 = arith.constant 0 : i32
    %c0_i32_0 = arith.constant 0 : i32
    %c0_i32_1 = arith.constant 0 : i32
    return %arg0, %c0_i32, %c0_i32_0 : i32, i32, i32
  }
  func.func @transform_1(%arg0: i32) -> (i32, i32) {
    %c0_i32 = arith.constant 0 : i32
    %c0_i32_0 = arith.constant 0 : i32
    %c0_i32_1 = arith.constant 0 : i32
    return %c0_i32, %c0_i32_0 : i32, i32
  }
  func.func @transform_2(%arg0: i32) -> (i32, i32) {
    %c0_i32 = arith.constant 0 : i32
    %c0_i32_0 = arith.constant 0 : i32
    %c0_i32_1 = arith.constant 0 : i32
    return %c0_i32, %c0_i32_0 : i32, i32
  }
  func.func @transform_3(%arg0: i32) -> (i32, i32) {
    %c0_i32 = arith.constant 0 : i32
    %c0_i32_0 = arith.constant 0 : i32
    %c0_i32_1 = arith.constant 0 : i32
    return %c0_i32, %c0_i32_0 : i32, i32
  }
  func.func @transform_4(%arg0: i32) -> (i32, i32) {
    %c0_i32 = arith.constant 0 : i32
    %c0_i32_0 = arith.constant 0 : i32
    %c0_i32_1 = arith.constant 0 : i32
    return %c0_i32, %c0_i32_0 : i32, i32
  }
  func.func @transform_5(%arg0: i32) -> (i32, i32, i32) {
    %c0_i32 = arith.constant 0 : i32
    %c0_i32_0 = arith.constant 0 : i32
    %c0_i32_1 = arith.constant 0 : i32
    return %arg0, %c0_i32, %c0_i32_0 : i32, i32, i32
  }
}

</mosaic_0001>

<llo_original>
// kernel: tpu_custom_call.1
$region0: #{tpu_custom_call.1}
  #allocation0 [shape = 'u32[]', space=smem, size = 0x4, offset = 0x4, fixed_abs, tag = 'smem constant byte address 0x4 - core index']
  #allocation1 [shape = 'u32[72,128]{1,0:T(1,128)}', space=vmem, size = 0x9000, scoped, tag = 'internal scratch']
  %s0 = inlined_call_operand.hbm [shape: f32[2,8,32], index: 0, kind: input, shape index: {}]
  %s1 = inlined_call_operand.hbm [shape: f32[32,96], index: 1, kind: input, shape index: {}]
  %s2 = inlined_call_operand.vmem [shape: f32[1,96], index: 2, kind: input, shape index: {}]
  %s3 = inlined_call_operand.hbm [shape: f32[32,32], index: 3, kind: input, shape index: {}]
  %s4 = inlined_call_operand.vmem [shape: f32[1,32], index: 4, kind: input, shape index: {}]
  %s5 = inlined_call_operand.hbm [shape: f32[2,8,32], index: 5, kind: output, shape index: {}]
  %s6 = sld [smem:[#allocation0]]
  $region42: #{tpu_custom_call.1} parent=0
    _
  %s8 = ssub.s32 1, %s6
  %s9 = scalar_select 0, %s8, %s6
  $region1: #{tpu_custom_call.1} parent=0
    #allocation2 [shape = 'u8[8192]{0}', space=vmem, size = 0x2000, scoped, tag = 'input window, operand 0, single buffered']
    #allocation3 [shape = 's32[1]{0}', space=sflag, size = 0x4, scoped, tag = 'scoped memory for tpu_custom_call.1']
    #allocation4 [shape = 's32[1]{0}', space=sflag, size = 0x4, scoped, tag = 'scoped memory for tpu_custom_call.1']
    #allocation5 [shape = 'u8[16384]{0}', space=vmem, size = 0x4000, scoped, tag = 'input window, operand 1, single buffered']
    #allocation6 [shape = 's32[1]{0}', space=sflag, size = 0x4, scoped, tag = 'scoped memory for tpu_custom_call.1']
    #allocation7 [shape = 'u8[16384]{0}', space=vmem, size = 0x4000, scoped, tag = 'input window, operand 3, single buffered']
    #allocation8 [shape = 'u8[8192]{0}', space=vmem, size = 0x2000, scoped, tag = 'output window, operand 0, single buffered']
    %10 = vsyncpa [#allocation3], 0
    %11 = vsyncpa [#allocation6], 0
    %12 = vsyncpa [#allocation4], 0
    // Predicated region
    $region2: #{tpu_custom_call.1} parent=1 // pred_check
      _
    $region3: #{tpu_custom_call.1} parent=1 // pred_check_branch
      %14 = sbr.rel (0) target = $region5
    $region4: #{tpu_custom_call.1} parent=1 // pred_region
      %16 = vsyncadd [#allocation3], 0
      %s17 = sshll.u32 %s0, 4
      %s18 = int_to_ptr.hbm [resolvable:$true] %s17
      %s19 = sshll.u32 [#allocation2], 4
      %s20 = int_to_ptr.vmem [resolvable:$true] %s19
      %25 = dma.hbm_to_vmem [thread:$0]  %s18, 256, %s20, [#allocation3], 128, 128, 8
    $region5: #{tpu_custom_call.1} parent=1 // pred_fallthru
      _
    // Predicated region
    $region6: #{tpu_custom_call.1} parent=1 // pred_check
      _
    $region7: #{tpu_custom_call.1} parent=1 // pred_check_branch
      %27 = sbr.rel (0) target = $region9
    $region8: #{tpu_custom_call.1} parent=1 // pred_region
      %29 = vsyncadd [#allocation6], 0
      %s30 = sshll.u32 %s1, 4
      %s31 = int_to_ptr.hbm [resolvable:$true] %s30
      %s32 = sshll.u32 [#allocation5], 4
      %s33 = int_to_ptr.vmem [resolvable:$true] %s32
      %38 = dma.hbm_to_vmem [thread:$0]  %s31, 512, %s33, [#allocation6], 128, 128, 8
    $region9: #{tpu_custom_call.1} parent=1 // pred_fallthru
      _
    // Predicated region
    $region10: #{tpu_custom_call.1} parent=1 // pred_check
      _
    $region11: #{tpu_custom_call.1} parent=1 // pred_check_branch
      %40 = sbr.rel (0) target = $region13
    $region12: #{tpu_custom_call.1} parent=1 // pred_region
      _
    $region13: #{tpu_custom_call.1} parent=1 // pred_fallthru
      _
    // Predicated region
    $region14: #{tpu_custom_call.1} parent=1 // pred_check
      _
    $region15: #{tpu_custom_call.1} parent=1 // pred_check_branch
      %42 = sbr.rel (0) target = $region17
    $region16: #{tpu_custom_call.1} parent=1 // pred_region
      %44 = vsyncadd [#allocation6], 0
      %s45 = sshll.u32 %s3, 4
      %s46 = int_to_ptr.hbm [resolvable:$true] %s45
      %s47 = sshll.u32 [#allocation7], 4
      %s48 = int_to_ptr.vmem [resolvable:$true] %s47
      %53 = dma.hbm_to_vmem [thread:$0]  %s46, 512, %s48, [#allocation6], 128, 128, 8
    $region17: #{tpu_custom_call.1} parent=1 // pred_fallthru
      _
    // Predicated region
    $region18: #{tpu_custom_call.1} parent=1 // pred_check
      _
    $region19: #{tpu_custom_call.1} parent=1 // pred_check_branch
      %55 = sbr.rel (0) target = $region21
    $region20: #{tpu_custom_call.1} parent=1 // pred_region
      _
    $region21: #{tpu_custom_call.1} parent=1 // pred_fallthru
      _
    // Predicated region
    $region22: #{tpu_custom_call.1} parent=1 // pred_check
      _
    $region23: #{tpu_custom_call.1} parent=1 // pred_check_branch
      %57 = sbr.rel (0) target = $region25
    $region24: #{tpu_custom_call.1} parent=1 // pred_region
      %59 = dma.done [#allocation3], 256
    $region25: #{tpu_custom_call.1} parent=1 // pred_fallthru
      _
    // Predicated region
    $region26: #{tpu_custom_call.1} parent=1 // pred_check
      _
    $region27: #{tpu_custom_call.1} parent=1 // pred_check_branch
      %61 = sbr.rel (0) target = $region29
    $region28: #{tpu_custom_call.1} parent=1 // pred_region
      %63 = dma.done [#allocation6], 512
    $region29: #{tpu_custom_call.1} parent=1 // pred_fallthru
      _
    // Predicated region
    $region30: #{tpu_custom_call.1} parent=1 // pred_check
      _
    $region31: #{tpu_custom_call.1} parent=1 // pred_check_branch
      %65 = sbr.rel (0) target = $region33
    $region32: #{tpu_custom_call.1} parent=1 // pred_region
      %67 = dma.done [#allocation6], 512
    $region33: #{tpu_custom_call.1} parent=1 // pred_fallthru
      _
    %v68 = vld [vmem:[#allocation2] sm:$0xff]
    %v69 = vld [vmem:[#allocation2 + $0x8] sm:$0xff]
    %v70 = vld [vmem:[#allocation5] sm:$0xff]
    %v71 = vld [vmem:[#allocation5 + $0x8] sm:$0xff]
    %v72 = vld [vmem:[#allocation5 + $0x10] sm:$0xff]
    %v73 = vld [vmem:[#allocation5 + $0x18] sm:$0xff]
    %v74 = vld [vmem:[%s2] sm:$0x1]
    %v76 = vperm.slane %v74, 0
    %vm78 = vcmask 261120
    %v80 = vsel %vm78, %v68, 0
    %v83 = vsel %vm78, %v69, 0
    %85 = vmatpush.msra.mxu0 0.0
    %86 = vmatpush.msra.mxu0 0.0
    %87 = vmatpush.msra.mxu0 0.0
    %88 = vmatpush.msra.mxu0 0.0
    %89 = vmatpush.msra.mxu0 0.0
    %90 = vmatpush.msra.mxu0 0.0
    %91 = vmatpush.msra.mxu0 0.0
    %92 = vmatpush.msra.mxu0 0.0
    %93 = vmatpush.msra.mxu0 0.0
    %94 = vmatpush.msra.mxu0 0.0
    %95 = vmatpush.msra.mxu0 0.0
    %96 = vmatpush.msra.mxu0 0.0
    %97 = vmatpush.msra.mxu0 %v73
    %98 = vmatpush.msra.mxu0 %v72
    %99 = vmatpush.msra.mxu0 %v71
    %100 = vmatpush.msra.mxu0 %v70
    %101 = vmatmul.f32.gmra.mxu0 %v80
    %v102 = vpop.f32.mrf.mxu0
    %v103 = vadd.f32 %v76, %v102
    %104 = vmatmul.f32.gmra.mxu0 %v83
    %v105 = vpop.f32.mrf.mxu0
    %v106 = vadd.f32 %v76, %v105
    %107 = vdwg.mxu0
    %v108 = vlaneseq
    %v109 = vshrl.u32 %v108, 7
    %v110 = vlaneseq
    %v111 = vand.u32 %v110, 127
    %vm112 = vcmp.ge.s32.totalorder %v109, %v111
    %114 = vrot.lane.b32.xlu0 %v103, 96
    %v115 = vpop.permute.xlu0 %114
    %vm116 = vcmask 64512
    %v117 = vsel %vm116, %v103, 0
    %v119 = vsel %vm116, %v115, 0
    %121 = vmatpush.xpose.msra.mxu0 0.0
    %122 = vmatpush.xpose.msra.mxu0 0.0
    %123 = vmatpush.xpose.msra.mxu0 0.0
    %124 = vmatpush.xpose.msra.mxu0 0.0
    %125 = vmatpush.xpose.msra.mxu0 0.0
    %126 = vmatpush.xpose.msra.mxu0 0.0
    %127 = vmatpush.xpose.msra.mxu0 0.0
    %128 = vmatpush.xpose.msra.mxu0 0.0
    %129 = vmatpush.xpose.msra.mxu0 0.0
    %130 = vmatpush.xpose.msra.mxu0 0.0
    %131 = vmatpush.xpose.msra.mxu0 0.0
    %132 = vmatpush.xpose.msra.mxu0 0.0
    %133 = vmatpush.xpose.msra.mxu0 0.0
    %134 = vmatpush.xpose.msra.mxu0 0.0
    %135 = vmatpush.xpose.msra.mxu0 0.0
    %136 = vmatpush.xpose.msra.mxu0 %v119
    %137 = vmatmul.f32.gmra.mxu0 %v117
    %v138 = vpop.f32.mrf.mxu0
    %v139 = vadd.f32 0.0, %v138
    %140 = vdwg.mxu0
    %142 = vrot.lane.b32.xlu0 %v106, 96
    %v143 = vpop.permute.xlu0 %142
    %v144 = vsel %vm116, %v106, 0
    %v146 = vsel %vm116, %v143, 0
    %148 = vmatpush.xpose.msra.mxu0 0.0
    %149 = vmatpush.xpose.msra.mxu0 0.0
    %150 = vmatpush.xpose.msra.mxu0 0.0
    %151 = vmatpush.xpose.msra.mxu0 0.0
    %152 = vmatpush.xpose.msra.mxu0 0.0
    %153 = vmatpush.xpose.msra.mxu0 0.0
    %154 = vmatpush.xpose.msra.mxu0 0.0
    %155 = vmatpush.xpose.msra.mxu0 0.0
    %156 = vmatpush.xpose.msra.mxu0 0.0
    %157 = vmatpush.xpose.msra.mxu0 0.0
    %158 = vmatpush.xpose.msra.mxu0 0.0
    %159 = vmatpush.xpose.msra.mxu0 0.0
    %160 = vmatpush.xpose.msra.mxu0 0.0
    %161 = vmatpush.xpose.msra.mxu0 0.0
    %162 = vmatpush.xpose.msra.mxu0 0.0
    %163 = vmatpush.xpose.msra.mxu0 %v146
    %164 = vmatmul.f32.gmra.mxu0 %v144
    %v165 = vpop.f32.mrf.mxu0
    %v166 = vadd.f32 0.0, %v165
    %167 = vdwg.mxu0
    %v168 = vsel %vm112, 1, 0
    %vm169 = vcmp.eq.s32.totalorder %v168, 1
    %v170 = vsel %vm169, %v139, -inf
    %v171 = vsel %vm169, %v166, -inf
    %v172 = vsel %vm116, %v170, -inf
    %173 = vmax.xlane.f32.xlu0 %v172
    %v174 = vpop.xlane.xlu0 %173
    %v175 = vsel %vm116, %v171, -inf
    %176 = vmax.xlane.f32.xlu0 %v175
    %v177 = vpop.xlane.xlu0 %176
    %v178 = vsub.f32 %v170, %v174
    %v179 = vsub.f32 %v171, %v177
    %v180 = vmul.f32 %v178, 1.442695
    %v181 = vpow.pop %v180
    %v182 = vmul.f32 %v179, 1.442695
    %v183 = vpow.pop %v182
    %v184 = vsel %vm116, %v181, 0.0
    %185 = vadd.xlane.f32.xlu0 %v184
    %v186 = vpop.xlane.xlu0 %185
    %v187 = vsel %vm116, %v183, 0.0
    %188 = vadd.xlane.f32.xlu0 %v187
    %v189 = vpop.xlane.xlu0 %188
    %v190 = vrcp.pop %v186
    %v191 = vrcp.pop %v189
    %v192 = vmul.f32 %v181, %v190
    %v193 = vmul.f32 %v183, %v191
    %194 = vrot.lane.b32.xlu0 %v103, 64
    %v195 = vpop.permute.xlu0 %194
    %v198 = vsel %vm116, %v192, 0
    %200 = vmatpush.msra.mxu0 0.0
    %201 = vmatpush.msra.mxu0 0.0
    %202 = vmatpush.msra.mxu0 0.0
    %203 = vmatpush.msra.mxu0 0.0
    %204 = vmatpush.msra.mxu0 0.0
    %205 = vmatpush.msra.mxu0 0.0
    %206 = vmatpush.msra.mxu0 0.0
    %207 = vmatpush.msra.mxu0 0.0
    %208 = vmatpush.msra.mxu0 0.0
    %209 = vmatpush.msra.mxu0 0.0
    %210 = vmatpush.msra.mxu0 0.0
    %211 = vmatpush.msra.mxu0 0.0
    %212 = vmatpush.msra.mxu0 0.0
    %213 = vmatpush.msra.mxu0 0.0
    %214 = vmatpush.msra.mxu0 0.0
    %215 = vmatpush.msra.mxu0 %v195
    %216 = vmatmul.f32.gmra.mxu0 %v198
    %v217 = vpop.f32.mrf.mxu0
    %v218 = vadd.f32 0.0, %v217
    %219 = vdwg.mxu0
    %220 = vrot.lane.b32.xlu0 %v106, 64
    %v221 = vpop.permute.xlu0 %220
    %v224 = vsel %vm116, %v193, 0
    %226 = vmatpush.msra.mxu0 0.0
    %227 = vmatpush.msra.mxu0 0.0
    %228 = vmatpush.msra.mxu0 0.0
    %229 = vmatpush.msra.mxu0 0.0
    %230 = vmatpush.msra.mxu0 0.0
    %231 = vmatpush.msra.mxu0 0.0
    %232 = vmatpush.msra.mxu0 0.0
    %233 = vmatpush.msra.mxu0 0.0
    %234 = vmatpush.msra.mxu0 0.0
    %235 = vmatpush.msra.mxu0 0.0
    %236 = vmatpush.msra.mxu0 0.0
    %237 = vmatpush.msra.mxu0 0.0
    %238 = vmatpush.msra.mxu0 0.0
    %239 = vmatpush.msra.mxu0 0.0
    %240 = vmatpush.msra.mxu0 0.0
    %241 = vmatpush.msra.mxu0 %v221
    %242 = vmatmul.f32.gmra.mxu0 %v224
    %v243 = vpop.f32.mrf.mxu0
    %v244 = vadd.f32 0.0, %v243
    %245 = vdwg.mxu0
    %v246 = vld [vmem:[#allocation7] sm:$0xff]
    %247 = vrot.lane.b32.xlu0 %v103, 120
    %v248 = vpop.permute.xlu0 %247
    %249 = vrot.lane.b32.xlu0 %v103, 88
    %v250 = vpop.permute.xlu0 %249
    %v251 = vsel %vm116, %v248, 0
    %v253 = vsel %vm116, %v250, 0
    %255 = vmatpush.xpose.msra.mxu0 0.0
    %256 = vmatpush.xpose.msra.mxu0 0.0
    %257 = vmatpush.xpose.msra.mxu0 0.0
    %258 = vmatpush.xpose.msra.mxu0 0.0
    %259 = vmatpush.xpose.msra.mxu0 0.0
    %260 = vmatpush.xpose.msra.mxu0 0.0
    %261 = vmatpush.xpose.msra.mxu0 0.0
    %262 = vmatpush.xpose.msra.mxu0 0.0
    %263 = vmatpush.xpose.msra.mxu0 0.0
    %264 = vmatpush.xpose.msra.mxu0 0.0
    %265 = vmatpush.xpose.msra.mxu0 0.0
    %266 = vmatpush.xpose.msra.mxu0 0.0
    %267 = vmatpush.xpose.msra.mxu0 0.0
    %268 = vmatpush.xpose.msra.mxu0 0.0
    %269 = vmatpush.xpose.msra.mxu0 0.0
    %270 = vmatpush.xpose.msra.mxu0 %v253
    %271 = vmatmul.f32.gmra.mxu0 %v251
    %v272 = vpop.f32.mrf.mxu0
    %v273 = vadd.f32 0.0, %v272
    %274 = vdwg.mxu0
    %275 = vrot.lane.b32.xlu0 %v106, 120
    %v276 = vpop.permute.xlu0 %275
    %277 = vrot.lane.b32.xlu0 %v106, 88
    %v278 = vpop.permute.xlu0 %277
    %v279 = vsel %vm116, %v276, 0
    %v281 = vsel %vm116, %v278, 0
    %283 = vmatpush.xpose.msra.mxu0 0.0
    %284 = vmatpush.xpose.msra.mxu0 0.0
    %285 = vmatpush.xpose.msra.mxu0 0.0
    %286 = vmatpush.xpose.msra.mxu0 0.0
    %287 = vmatpush.xpose.msra.mxu0 0.0
    %288 = vmatpush.xpose.msra.mxu0 0.0
    %289 = vmatpush.xpose.msra.mxu0 0.0
    %290 = vmatpush.xpose.msra.mxu0 0.0
    %291 = vmatpush.xpose.msra.mxu0 0.0
    %292 = vmatpush.xpose.msra.mxu0 0.0
    %293 = vmatpush.xpose.msra.mxu0 0.0
    %294 = vmatpush.xpose.msra.mxu0 0.0
    %295 = vmatpush.xpose.msra.mxu0 0.0
    %296 = vmatpush.xpose.msra.mxu0 0.0
    %297 = vmatpush.xpose.msra.mxu0 0.0
    %298 = vmatpush.xpose.msra.mxu0 %v281
    %299 = vmatmul.f32.gmra.mxu0 %v279
    %v300 = vpop.f32.mrf.mxu0
    %v301 = vadd.f32 0.0, %v300
    %302 = vdwg.mxu0
    %v303 = vsel %vm169, %v273, -inf
    %v304 = vsel %vm169, %v301, -inf
    %v305 = vsel %vm116, %v303, -inf
    %306 = vmax.xlane.f32.xlu0 %v305
    %v307 = vpop.xlane.xlu0 %306
    %v308 = vsel %vm116, %v304, -inf
    %309 = vmax.xlane.f32.xlu0 %v308
    %v310 = vpop.xlane.xlu0 %309
    %v311 = vsub.f32 %v303, %v307
    %v312 = vsub.f32 %v304, %v310
    %v313 = vmul.f32 %v311, 1.442695
    %v314 = vpow.pop %v313
    %v315 = vmul.f32 %v312, 1.442695
    %v316 = vpow.pop %v315
    %v317 = vsel %vm116, %v314, 0.0
    %318 = vadd.xlane.f32.xlu0 %v317
    %v319 = vpop.xlane.xlu0 %318
    %v320 = vsel %vm116, %v316, 0.0
    %321 = vadd.xlane.f32.xlu0 %v320
    %v322 = vpop.xlane.xlu0 %321
    %v323 = vrcp.pop %v319
    %v324 = vrcp.pop %v322
    %v325 = vmul.f32 %v314, %v323
    %v326 = vmul.f32 %v316, %v324
    %327 = vrot.lane.b32.xlu0 %v103, 56
    %v328 = vpop.permute.xlu0 %327
    %v331 = vsel %vm116, %v325, 0
    %333 = vmatpush.msra.mxu0 0.0
    %334 = vmatpush.msra.mxu0 0.0
    %335 = vmatpush.msra.mxu0 0.0
    %336 = vmatpush.msra.mxu0 0.0
    %337 = vmatpush.msra.mxu0 0.0
    %338 = vmatpush.msra.mxu0 0.0
    %339 = vmatpush.msra.mxu0 0.0
    %340 = vmatpush.msra.mxu0 0.0
    %341 = vmatpush.msra.mxu0 0.0
    %342 = vmatpush.msra.mxu0 0.0
    %343 = vmatpush.msra.mxu0 0.0
    %344 = vmatpush.msra.mxu0 0.0
    %345 = vmatpush.msra.mxu0 0.0
    %346 = vmatpush.msra.mxu0 0.0
    %347 = vmatpush.msra.mxu0 0.0
    %348 = vmatpush.msra.mxu0 %v328
    %349 = vmatmul.f32.gmra.mxu0 %v331
    %v350 = vpop.f32.mrf.mxu0
    %v351 = vadd.f32 0.0, %v350
    %352 = vdwg.mxu0
    %353 = vrot.lane.b32.xlu0 %v106, 56
    %v354 = vpop.permute.xlu0 %353
    %v357 = vsel %vm116, %v326, 0
    %359 = vmatpush.msra.mxu0 0.0
    %360 = vmatpush.msra.mxu0 0.0
    %361 = vmatpush.msra.mxu0 0.0
    %362 = vmatpush.msra.mxu0 0.0
    %363 = vmatpush.msra.mxu0 0.0
    %364 = vmatpush.msra.mxu0 0.0
    %365 = vmatpush.msra.mxu0 0.0
    %366 = vmatpush.msra.mxu0 0.0
    %367 = vmatpush.msra.mxu0 0.0
    %368 = vmatpush.msra.mxu0 0.0
    %369 = vmatpush.msra.mxu0 0.0
    %370 = vmatpush.msra.mxu0 0.0
    %371 = vmatpush.msra.mxu0 0.0
    %372 = vmatpush.msra.mxu0 0.0
    %373 = vmatpush.msra.mxu0 0.0
    %374 = vmatpush.msra.mxu0 %v354
    %375 = vmatmul.f32.gmra.mxu0 %v357
    %v376 = vpop.f32.mrf.mxu0
    %v377 = vadd.f32 0.0, %v376
    %378 = vdwg.mxu0
    %v379 = vld [vmem:[#allocation7 + $0x8] sm:$0xff]
    %v381 = vsel %vm116, %v351, 0
    %v384 = vsel %vm116, %v377, 0
    %386 = vmatpush.msra.mxu0 0.0
    %387 = vmatpush.msra.mxu0 0.0
    %388 = vmatpush.msra.mxu0 0.0
    %389 = vmatpush.msra.mxu0 0.0
    %390 = vmatpush.msra.mxu0 0.0
    %391 = vmatpush.msra.mxu0 0.0
    %392 = vmatpush.msra.mxu0 0.0
    %393 = vmatpush.msra.mxu0 0.0
    %394 = vmatpush.msra.mxu0 0.0
    %395 = vmatpush.msra.mxu0 0.0
    %396 = vmatpush.msra.mxu0 0.0
    %397 = vmatpush.msra.mxu0 0.0
    %398 = vmatpush.msra.mxu0 0.0
    %399 = vmatpush.msra.mxu0 0.0
    %400 = vmatpush.msra.mxu0 0.0
    %401 = vmatpush.msra.mxu0 %v379
    %402 = vmatmul.f32.gmra.mxu0 %v381
    %v403 = vpop.f32.mrf.mxu0
    %v404 = vadd.f32 0.0, %v403
    %405 = vmatmul.f32.gmra.mxu0 %v384
    %v406 = vpop.f32.mrf.mxu0
    %v407 = vadd.f32 0.0, %v406
    %408 = vdwg.mxu0
    %v410 = vsel %vm116, %v218, 0
    %v413 = vsel %vm116, %v244, 0
    %415 = vmatpush.msra.mxu0 0.0
    %416 = vmatpush.msra.mxu0 0.0
    %417 = vmatpush.msra.mxu0 0.0
    %418 = vmatpush.msra.mxu0 0.0
    %419 = vmatpush.msra.mxu0 0.0
    %420 = vmatpush.msra.mxu0 0.0
    %421 = vmatpush.msra.mxu0 0.0
    %422 = vmatpush.msra.mxu0 0.0
    %423 = vmatpush.msra.mxu0 0.0
    %424 = vmatpush.msra.mxu0 0.0
    %425 = vmatpush.msra.mxu0 0.0
    %426 = vmatpush.msra.mxu0 0.0
    %427 = vmatpush.msra.mxu0 0.0
    %428 = vmatpush.msra.mxu0 0.0
    %429 = vmatpush.msra.mxu0 0.0
    %430 = vmatpush.msra.mxu0 %v246
    %431 = vmatmul.f32.gmra.mxu0 %v410
    %v432 = vpop.f32.mrf.mxu0
    %v433 = vadd.f32 %v404, %v432
    %434 = vmatmul.f32.gmra.mxu0 %v413
    %v435 = vpop.f32.mrf.mxu0
    %v436 = vadd.f32 %v407, %v435
    %437 = vdwg.mxu0
    %438 = vrot.lane.b32.xlu0 %v103, 112
    %v439 = vpop.permute.xlu0 %438
    %440 = vrot.lane.b32.xlu0 %v103, 80
    %v441 = vpop.permute.xlu0 %440
    %v442 = vsel %vm116, %v439, 0
    %v444 = vsel %vm116, %v441, 0
    %446 = vmatpush.xpose.msra.mxu0 0.0
    %447 = vmatpush.xpose.msra.mxu0 0.0
    %448 = vmatpush.xpose.msra.mxu0 0.0
    %449 = vmatpush.xpose.msra.mxu0 0.0
    %450 = vmatpush.xpose.msra.mxu0 0.0
    %451 = vmatpush.xpose.msra.mxu0 0.0
    %452 = vmatpush.xpose.msra.mxu0 0.0
    %453 = vmatpush.xpose.msra.mxu0 0.0
    %454 = vmatpush.xpose.msra.mxu0 0.0
    %455 = vmatpush.xpose.msra.mxu0 0.0
    %456 = vmatpush.xpose.msra.mxu0 0.0
    %457 = vmatpush.xpose.msra.mxu0 0.0
    %458 = vmatpush.xpose.msra.mxu0 0.0
    %459 = vmatpush.xpose.msra.mxu0 0.0
    %460 = vmatpush.xpose.msra.mxu0 0.0
    %461 = vmatpush.xpose.msra.mxu0 %v444
    %462 = vmatmul.f32.gmra.mxu0 %v442
    %v463 = vpop.f32.mrf.mxu0
    %v464 = vadd.f32 0.0, %v463
    %465 = vdwg.mxu0
    %466 = vrot.lane.b32.xlu0 %v106, 112
    %v467 = vpop.permute.xlu0 %466
    %468 = vrot.lane.b32.xlu0 %v106, 80
    %v469 = vpop.permute.xlu0 %468
    %v470 = vsel %vm116, %v467, 0
    %v472 = vsel %vm116, %v469, 0
    %474 = vmatpush.xpose.msra.mxu0 0.0
    %475 = vmatpush.xpose.msra.mxu0 0.0
    %476 = vmatpush.xpose.msra.mxu0 0.0
    %477 = vmatpush.xpose.msra.mxu0 0.0
    %478 = vmatpush.xpose.msra.mxu0 0.0
    %479 = vmatpush.xpose.msra.mxu0 0.0
    %480 = vmatpush.xpose.msra.mxu0 0.0
    %481 = vmatpush.xpose.msra.mxu0 0.0
    %482 = vmatpush.xpose.msra.mxu0 0.0
    %483 = vmatpush.xpose.msra.mxu0 0.0
    %484 = vmatpush.xpose.msra.mxu0 0.0
    %485 = vmatpush.xpose.msra.mxu0 0.0
    %486 = vmatpush.xpose.msra.mxu0 0.0
    %487 = vmatpush.xpose.msra.mxu0 0.0
    %488 = vmatpush.xpose.msra.mxu0 0.0
    %489 = vmatpush.xpose.msra.mxu0 %v472
    %490 = vmatmul.f32.gmra.mxu0 %v470
    %v491 = vpop.f32.mrf.mxu0
    %v492 = vadd.f32 0.0, %v491
    %493 = vdwg.mxu0
    %v494 = vsel %vm169, %v464, -inf
    %v495 = vsel %vm169, %v492, -inf
    %v496 = vsel %vm116, %v494, -inf
    %497 = vmax.xlane.f32.xlu0 %v496
    %v498 = vpop.xlane.xlu0 %497
    %v499 = vsel %vm116, %v495, -inf
    %500 = vmax.xlane.f32.xlu0 %v499
    %v501 = vpop.xlane.xlu0 %500
    %v502 = vsub.f32 %v494, %v498
    %v503 = vsub.f32 %v495, %v501
    %v504 = vmul.f32 %v502, 1.442695
    %v505 = vpow.pop %v504
    %v506 = vmul.f32 %v503, 1.442695
    %v507 = vpow.pop %v506
    %v508 = vsel %vm116, %v505, 0.0
    %509 = vadd.xlane.f32.xlu0 %v508
    %v510 = vpop.xlane.xlu0 %509
    %v511 = vsel %vm116, %v507, 0.0
    %512 = vadd.xlane.f32.xlu0 %v511
    %v513 = vpop.xlane.xlu0 %512
    %v514 = vrcp.pop %v510
    %v515 = vrcp.pop %v513
    %v516 = vmul.f32 %v505, %v514
    %v517 = vmul.f32 %v507, %v515
    %518 = vrot.lane.b32.xlu0 %v103, 48
    %v519 = vpop.permute.xlu0 %518
    %v522 = vsel %vm116, %v516, 0
    %524 = vmatpush.msra.mxu0 0.0
    %525 = vmatpush.msra.mxu0 0.0
    %526 = vmatpush.msra.mxu0 0.0
    %527 = vmatpush.msra.mxu0 0.0
    %528 = vmatpush.msra.mxu0 0.0
    %529 = vmatpush.msra.mxu0 0.0
    %530 = vmatpush.msra.mxu0 0.0
    %531 = vmatpush.msra.mxu0 0.0
    %532 = vmatpush.msra.mxu0 0.0
    %533 = vmatpush.msra.mxu0 0.0
    %534 = vmatpush.msra.mxu0 0.0
    %535 = vmatpush.msra.mxu0 0.0
    %536 = vmatpush.msra.mxu0 0.0
    %537 = vmatpush.msra.mxu0 0.0
    %538 = vmatpush.msra.mxu0 0.0
    %539 = vmatpush.msra.mxu0 %v519
    %540 = vmatmul.f32.gmra.mxu0 %v522
    %v541 = vpop.f32.mrf.mxu0
    %v542 = vadd.f32 0.0, %v541
    %543 = vdwg.mxu0
    %544 = vrot.lane.b32.xlu0 %v106, 48
    %v545 = vpop.permute.xlu0 %544
    %v548 = vsel %vm116, %v517, 0
    %550 = vmatpush.msra.mxu0 0.0
    %551 = vmatpush.msra.mxu0 0.0
    %552 = vmatpush.msra.mxu0 0.0
    %553 = vmatpush.msra.mxu0 0.0
    %554 = vmatpush.msra.mxu0 0.0
    %555 = vmatpush.msra.mxu0 0.0
    %556 = vmatpush.msra.mxu0 0.0
    %557 = vmatpush.msra.mxu0 0.0
    %558 = vmatpush.msra.mxu0 0.0
    %559 = vmatpush.msra.mxu0 0.0
    %560 = vmatpush.msra.mxu0 0.0
    %561 = vmatpush.msra.mxu0 0.0
    %562 = vmatpush.msra.mxu0 0.0
    %563 = vmatpush.msra.mxu0 0.0
    %564 = vmatpush.msra.mxu0 0.0
    %565 = vmatpush.msra.mxu0 %v545
    %566 = vmatmul.f32.gmra.mxu0 %v548
    %v567 = vpop.f32.mrf.mxu0
    %v568 = vadd.f32 0.0, %v567
    %569 = vdwg.mxu0
    %v570 = vld [vmem:[#allocation7 + $0x10] sm:$0xff]
    %v572 = vsel %vm116, %v542, 0
    %v575 = vsel %vm116, %v568, 0
    %577 = vmatpush.msra.mxu0 0.0
    %578 = vmatpush.msra.mxu0 0.0
    %579 = vmatpush.msra.mxu0 0.0
    %580 = vmatpush.msra.mxu0 0.0
    %581 = vmatpush.msra.mxu0 0.0
    %582 = vmatpush.msra.mxu0 0.0
    %583 = vmatpush.msra.mxu0 0.0
    %584 = vmatpush.msra.mxu0 0.0
    %585 = vmatpush.msra.mxu0 0.0
    %586 = vmatpush.msra.mxu0 0.0
    %587 = vmatpush.msra.mxu0 0.0
    %588 = vmatpush.msra.mxu0 0.0
    %589 = vmatpush.msra.mxu0 0.0
    %590 = vmatpush.msra.mxu0 0.0
    %591 = vmatpush.msra.mxu0 0.0
    %592 = vmatpush.msra.mxu0 %v570
    %593 = vmatmul.f32.gmra.mxu0 %v572
    %v594 = vpop.f32.mrf.mxu0
    %v595 = vadd.f32 0.0, %v594
    %596 = vmatmul.f32.gmra.mxu0 %v575
    %v597 = vpop.f32.mrf.mxu0
    %v598 = vadd.f32 0.0, %v597
    %599 = vdwg.mxu0
    %v600 = vadd.f32 %v433, %v595
    %v601 = vadd.f32 %v436, %v598
    %602 = vrot.lane.b32.xlu0 %v103, 104
    %v603 = vpop.permute.xlu0 %602
    %604 = vrot.lane.b32.xlu0 %v103, 72
    %v605 = vpop.permute.xlu0 %604
    %v606 = vsel %vm116, %v603, 0
    %v608 = vsel %vm116, %v605, 0
    %610 = vmatpush.xpose.msra.mxu0 0.0
    %611 = vmatpush.xpose.msra.mxu0 0.0
    %612 = vmatpush.xpose.msra.mxu0 0.0
    %613 = vmatpush.xpose.msra.mxu0 0.0
    %614 = vmatpush.xpose.msra.mxu0 0.0
    %615 = vmatpush.xpose.msra.mxu0 0.0
    %616 = vmatpush.xpose.msra.mxu0 0.0
    %617 = vmatpush.xpose.msra.mxu0 0.0
    %618 = vmatpush.xpose.msra.mxu0 0.0
    %619 = vmatpush.xpose.msra.mxu0 0.0
    %620 = vmatpush.xpose.msra.mxu0 0.0
    %621 = vmatpush.xpose.msra.mxu0 0.0
    %622 = vmatpush.xpose.msra.mxu0 0.0
    %623 = vmatpush.xpose.msra.mxu0 0.0
    %624 = vmatpush.xpose.msra.mxu0 0.0
    %625 = vmatpush.xpose.msra.mxu0 %v608
    %626 = vmatmul.f32.gmra.mxu0 %v606
    %v627 = vpop.f32.mrf.mxu0
    %v628 = vadd.f32 0.0, %v627
    %629 = vdwg.mxu0
    %630 = vrot.lane.b32.xlu0 %v106, 104
    %v631 = vpop.permute.xlu0 %630
    %632 = vrot.lane.b32.xlu0 %v106, 72
    %v633 = vpop.permute.xlu0 %632
    %v634 = vsel %vm116, %v631, 0
    %v636 = vsel %vm116, %v633, 0
    %638 = vmatpush.xpose.msra.mxu0 0.0
    %639 = vmatpush.xpose.msra.mxu0 0.0
    %640 = vmatpush.xpose.msra.mxu0 0.0
    %641 = vmatpush.xpose.msra.mxu0 0.0
    %642 = vmatpush.xpose.msra.mxu0 0.0
    %643 = vmatpush.xpose.msra.mxu0 0.0
    %644 = vmatpush.xpose.msra.mxu0 0.0
    %645 = vmatpush.xpose.msra.mxu0 0.0
    %646 = vmatpush.xpose.msra.mxu0 0.0
    %647 = vmatpush.xpose.msra.mxu0 0.0
    %648 = vmatpush.xpose.msra.mxu0 0.0
    %649 = vmatpush.xpose.msra.mxu0 0.0
    %650 = vmatpush.xpose.msra.mxu0 0.0
    %651 = vmatpush.xpose.msra.mxu0 0.0
    %652 = vmatpush.xpose.msra.mxu0 0.0
    %653 = vmatpush.xpose.msra.mxu0 %v636
    %654 = vmatmul.f32.gmra.mxu0 %v634
    %v655 = vpop.f32.mrf.mxu0
    %v656 = vadd.f32 0.0, %v655
    %657 = vdwg.mxu0
    %v658 = vsel %vm169, %v628, -inf
    %v659 = vsel %vm169, %v656, -inf
    %v660 = vsel %vm116, %v658, -inf
    %661 = vmax.xlane.f32.xlu0 %v660
    %v662 = vpop.xlane.xlu0 %661
    %v663 = vsel %vm116, %v659, -inf
    %664 = vmax.xlane.f32.xlu0 %v663
    %v665 = vpop.xlane.xlu0 %664
    %v666 = vsub.f32 %v658, %v662
    %v667 = vsub.f32 %v659, %v665
    %v668 = vmul.f32 %v666, 1.442695
    %v669 = vpow.pop %v668
    %v670 = vmul.f32 %v667, 1.442695
    %v671 = vpow.pop %v670
    %v672 = vsel %vm116, %v669, 0.0
    %673 = vadd.xlane.f32.xlu0 %v672
    %v674 = vpop.xlane.xlu0 %673
    %v675 = vsel %vm116, %v671, 0.0
    %676 = vadd.xlane.f32.xlu0 %v675
    %v677 = vpop.xlane.xlu0 %676
    %v678 = vrcp.pop %v674
    %v679 = vrcp.pop %v677
    %v680 = vmul.f32 %v669, %v678
    %v681 = vmul.f32 %v671, %v679
    %682 = vrot.lane.b32.xlu0 %v103, 40
    %v683 = vpop.permute.xlu0 %682
    %v686 = vsel %vm116, %v680, 0
    %688 = vmatpush.msra.mxu0 0.0
    %689 = vmatpush.msra.mxu0 0.0
    %690 = vmatpush.msra.mxu0 0.0
    %691 = vmatpush.msra.mxu0 0.0
    %692 = vmatpush.msra.mxu0 0.0
    %693 = vmatpush.msra.mxu0 0.0
    %694 = vmatpush.msra.mxu0 0.0
    %695 = vmatpush.msra.mxu0 0.0
    %696 = vmatpush.msra.mxu0 0.0
    %697 = vmatpush.msra.mxu0 0.0
    %698 = vmatpush.msra.mxu0 0.0
    %699 = vmatpush.msra.mxu0 0.0
    %700 = vmatpush.msra.mxu0 0.0
    %701 = vmatpush.msra.mxu0 0.0
    %702 = vmatpush.msra.mxu0 0.0
    %703 = vmatpush.msra.mxu0 %v683
    %704 = vmatmul.f32.gmra.mxu0 %v686
    %v705 = vpop.f32.mrf.mxu0
    %v706 = vadd.f32 0.0, %v705
    %707 = vdwg.mxu0
    %708 = vrot.lane.b32.xlu0 %v106, 40
    %v709 = vpop.permute.xlu0 %708
    %v712 = vsel %vm116, %v681, 0
    %714 = vmatpush.msra.mxu0 0.0
    %715 = vmatpush.msra.mxu0 0.0
    %716 = vmatpush.msra.mxu0 0.0
    %717 = vmatpush.msra.mxu0 0.0
    %718 = vmatpush.msra.mxu0 0.0
    %719 = vmatpush.msra.mxu0 0.0
    %720 = vmatpush.msra.mxu0 0.0
    %721 = vmatpush.msra.mxu0 0.0
    %722 = vmatpush.msra.mxu0 0.0
    %723 = vmatpush.msra.mxu0 0.0
    %724 = vmatpush.msra.mxu0 0.0
    %725 = vmatpush.msra.mxu0 0.0
    %726 = vmatpush.msra.mxu0 0.0
    %727 = vmatpush.msra.mxu0 0.0
    %728 = vmatpush.msra.mxu0 0.0
    %729 = vmatpush.msra.mxu0 %v709
    %730 = vmatmul.f32.gmra.mxu0 %v712
    %v731 = vpop.f32.mrf.mxu0
    %v732 = vadd.f32 0.0, %v731
    %733 = vdwg.mxu0
    %v734 = vld [vmem:[#allocation7 + $0x18] sm:$0xff]
    %v736 = vsel %vm116, %v706, 0
    %v739 = vsel %vm116, %v732, 0
    %741 = vmatpush.msra.mxu0 0.0
    %742 = vmatpush.msra.mxu0 0.0
    %743 = vmatpush.msra.mxu0 0.0
    %744 = vmatpush.msra.mxu0 0.0
    %745 = vmatpush.msra.mxu0 0.0
    %746 = vmatpush.msra.mxu0 0.0
    %747 = vmatpush.msra.mxu0 0.0
    %748 = vmatpush.msra.mxu0 0.0
    %749 = vmatpush.msra.mxu0 0.0
    %750 = vmatpush.msra.mxu0 0.0
    %751 = vmatpush.msra.mxu0 0.0
    %752 = vmatpush.msra.mxu0 0.0
    %753 = vmatpush.msra.mxu0 0.0
    %754 = vmatpush.msra.mxu0 0.0
    %755 = vmatpush.msra.mxu0 0.0
    %756 = vmatpush.msra.mxu0 %v734
    %757 = vmatmul.f32.gmra.mxu0 %v736
    %v758 = vpop.f32.mrf.mxu0
    %v759 = vadd.f32 0.0, %v758
    %760 = vmatmul.f32.gmra.mxu0 %v739
    %v761 = vpop.f32.mrf.mxu0
    %v762 = vadd.f32 0.0, %v761
    %763 = vdwg.mxu0
    %v764 = vadd.f32 %v600, %v759
    %v765 = vadd.f32 %v601, %v762
    %v766 = vld [vmem:[%s4] sm:$0x1]
    %v768 = vperm.slane %v766, 0
    %v770 = vadd.f32 %v764, %v768
    %v771 = vadd.f32 %v765, %v768
    %772 = vst.msk [vmem:[#allocation8] sm:$0xff] %vm78, %v770
    %773 = vst.msk [vmem:[#allocation8 + $0x8] sm:$0xff] %vm78, %v771
    // Predicated region
    $region34: #{tpu_custom_call.1} parent=1 // pred_check
      _
    $region35: #{tpu_custom_call.1} parent=1 // pred_check_branch
      %775 = sbr.rel (0) target = $region37
    $region36: #{tpu_custom_call.1} parent=1 // pred_region
      %777 = vsyncadd [#allocation4], 0
      %s778 = sshll.u32 [#allocation8], 4
      %s779 = int_to_ptr.vmem [resolvable:$true] %s778
      %s780 = sshll.u32 %s5, 4
      %s781 = int_to_ptr.hbm [resolvable:$true] %s780
      %786 = dma.vmem_to_hbm [thread:$0]  %s779, 256, %s781, [#allocation4], 128, 128, 8
    $region37: #{tpu_custom_call.1} parent=1 // pred_fallthru
      _
    // Predicated region
    $region38: #{tpu_custom_call.1} parent=1 // pred_check
      _
    $region39: #{tpu_custom_call.1} parent=1 // pred_check_branch
      %788 = sbr.rel (0) target = $region41
    $region40: #{tpu_custom_call.1} parent=1 // pred_region
      %790 = dma.done [#allocation4], 256
    $region41: #{tpu_custom_call.1} parent=1 // pred_fallthru
      _
    %791 = vsyncpa [#allocation3], 1
    %792 = vsyncpa [#allocation6], 1
    %793 = vsyncpa [#allocation4], 1

</llo_original>
